<compile_context>
chip_gen: v7x
topology: tpu7x:2x2x1
jax: 0.10.0
libtpu: 0.0.40
codegen_flags: <defaults>
</compile_context>

<pallas_src>
import jax
import jax.numpy as jnp
import numpy as np
from jax.experimental import pallas as pl
from jax.experimental.pallas import tpu as pltpu


def _fused_kernel(obj_ref, relT_ref, sidx_ref, oidx_ref,
                  oscore_ref, ocls_ref, relprobT_ref, rcls_ref, triple_ref):
    # ---------------- object branch: boxes on sublanes, classes on lanes ----------------
    obj = obj_ref[0].astype(jnp.float32)                       # (N, C)
    N, C = obj.shape
    ccol = jax.lax.broadcasted_iota(jnp.int32, (N, C), 1)      # class index per lane
    m = jnp.max(obj, axis=1, keepdims=True)                    # (N, 1)
    denom = jnp.sum(jnp.exp(obj - m), axis=1, keepdims=True)   # softmax denominator (incl. class 0)
    inv = pl.reciprocal(denom)                                 # exact 1/denom (EUP-friendly form)
    masked = jnp.where(ccol == 0, -jnp.inf, obj)               # background class excluded
    mmax = jnp.max(masked, axis=1, keepdims=True)              # (N, 1)
    score_col = jnp.exp(mmax - m) * inv                        # == max_{c>=1} softmax(obj)[c]
    # argmax on masked logits (monotone under softmax); min-index tie-break via max trick
    cand = jnp.where(masked == mmax, C - ccol, 0)
    cls_col = C - jnp.max(cand, axis=1, keepdims=True)         # (N, 1) int32, class id >= 1

    # row-ize (N,1) -> (1,N) with an exact one-hot select + sublane sum (lane-dense stores)
    r_io = jax.lax.broadcasted_iota(jnp.int32, (N, N), 0)
    c_io = jax.lax.broadcasted_iota(jnp.int32, (N, N), 1)
    eye = r_io == c_io
    oscore_ref[0] = jnp.sum(jnp.where(eye, score_col, 0.0), axis=0, keepdims=True)
    ocls_ref[0] = jnp.sum(jnp.where(eye, cls_col, 0), axis=0, keepdims=True).astype(jnp.int32)

    # ---------------- in-kernel gather of subject / object scores ----------------
    s_idx = sidx_ref[0]                                        # (1, R) int32
    o_idx = oidx_ref[0]                                        # (1, R) int32
    R = s_idx.shape[1]
    b_io = jax.lax.broadcasted_iota(jnp.int32, (N, R), 0)      # box index per sublane
    s0 = jnp.sum(jnp.where(b_io == s_idx, score_col, 0.0), axis=0, keepdims=True)   # (1, R)
    s1 = jnp.sum(jnp.where(b_io == o_idx, score_col, 0.0), axis=0, keepdims=True)   # (1, R)

    # ---------------- relation branch: predicates on sublanes, pairs on lanes ----------------
    rel = relT_ref[0].astype(jnp.float32)                      # (Cr, R)
    Cr = rel.shape[0]
    prow = jax.lax.broadcasted_iota(jnp.int32, (Cr, R), 0)     # predicate index per sublane
    mr = jnp.max(rel, axis=0, keepdims=True)                   # (1, R)
    er = jnp.exp(rel - mr)                                     # (Cr, R)
    denr = jnp.sum(er, axis=0, keepdims=True)
    invr = pl.reciprocal(denr)
    relprobT_ref[0] = er * invr                                # full predicate softmax (transposed layout)
    maskedr = jnp.where(prow == 0, -jnp.inf, rel)              # drop "no relation" class
    mmaxr = jnp.max(maskedr, axis=0, keepdims=True)
    rel_score = jnp.exp(mmaxr - mr) * invr                     # (1, R) max fg predicate prob
    candr = jnp.where(maskedr == mmaxr, Cr - prow, 0)
    rcls_ref[0] = (Cr - jnp.max(candr, axis=0, keepdims=True)).astype(jnp.int32)
    # triple_scores = rel_scores * obj_scores0 * obj_scores1
    triple_ref[0] = rel_score * s0 * s1


def post_process(rel_logits, obj_logits, rel_pair_idxs):
    B, N, C = obj_logits.shape
    _, R, Cr = rel_logits.shape

    # Layout plumbing (wrapper side): pairs onto the lane axis for the relation branch,
    # subject/object indices as lane-dense (B, 1, R) rows kept in VMEM.
    relT = jnp.swapaxes(rel_logits, 1, 2)                        # (B, Cr, R)
    sidx = rel_pair_idxs[:, :, 0][:, None, :].astype(jnp.int32)  # (B, 1, R)
    oidx = rel_pair_idxs[:, :, 1][:, None, :].astype(jnp.int32)  # (B, 1, R)

    oscore, ocls, relprobT, rcls, triple = pl.pallas_call(
        _fused_kernel,
        out_shape=(jax.ShapeDtypeStruct((B, 1, N), jnp.float32),   # per-box score (lane-dense)
                   jax.ShapeDtypeStruct((B, 1, N), jnp.int32),     # per-box class (lane-dense)
                   jax.ShapeDtypeStruct((B, Cr, R), jnp.float32),  # predicate distribution (transposed)
                   jax.ShapeDtypeStruct((B, 1, R), jnp.int32),     # predicate label (lane-dense)
                   jax.ShapeDtypeStruct((B, 1, R), jnp.float32)),  # triple score (lane-dense)
        grid=(B,),
        in_specs=[pl.BlockSpec((1, N, C), lambda b: (b, 0, 0)),
                  pl.BlockSpec((1, Cr, R), lambda b: (b, 0, 0)),
                  pl.BlockSpec((1, 1, R), lambda b: (b, 0, 0)),
                  pl.BlockSpec((1, 1, R), lambda b: (b, 0, 0))],
        out_specs=(pl.BlockSpec((1, 1, N), lambda b: (b, 0, 0)),
                   pl.BlockSpec((1, 1, N), lambda b: (b, 0, 0)),
                   pl.BlockSpec((1, Cr, R), lambda b: (b, 0, 0)),
                   pl.BlockSpec((1, 1, R), lambda b: (b, 0, 0)),
                   pl.BlockSpec((1, 1, R), lambda b: (b, 0, 0))),
        compiler_params=pltpu.CompilerParams(dimension_semantics=("parallel",)),
    )(obj_logits, relT, sidx, oidx)

    obj_scores = oscore[:, 0, :]      # (B, N)  'scores'
    obj_classes = ocls[:, 0, :]       # (B, N)  'pred_classes' (>= 1)
    rel_cls = rcls[:, 0, :]           # (B, R)
    triple = triple[:, 0, :]          # (B, R)

    # torch.sort(triple_scores, descending=True) + re-gather of relation outputs.
    # TODO(synk): sorting has no clean Pallas/TPU kernel equivalent; done in plain JAX
    # (if only top-K relations are needed downstream, jax.lax.top_k would avoid the full sort).
    order = jnp.argsort(-triple, axis=1)
    rel_pair_sorted = jnp.take_along_axis(rel_pair_idxs, order[..., None], axis=1)
    rel_prob_sorted = jnp.swapaxes(
        jnp.take_along_axis(relprobT, order[:, None, :], axis=2), 1, 2)   # back to (B, R, Cr)
    rel_labels_sorted = jnp.take_along_axis(rel_cls, order, axis=1)

    # TODO(synk): use_gt_box=False branch needs obj_prediction_nms (per-class box NMS) and the
    # attribute_on sigmoid branch; not implemented here.
    return {
        "scores": obj_scores,                 # per-box object score
        "pred_classes": obj_classes,          # per-box predicted class (>=1)
        "rel_pair_idxs": rel_pair_sorted,     # sorted by triple score, descending
        "rel_scores": rel_prob_sorted,        # sorted full predicate distribution
        "pred_rel_labels": rel_labels_sorted, # sorted predicate labels (>=1)
    }


def _reference(rel_logits, obj_logits, rel_pair_idxs):
    # pure-JAX reference mirroring the PyTorch forward (use_gt_box=True, softmax)
    obj_prob = jax.nn.softmax(obj_logits, axis=-1)
    obj_prob = obj_prob.at[..., 0].set(0.0)
    obj_scores = jnp.max(obj_prob[..., 1:], axis=-1)
    obj_pred = jnp.argmax(obj_prob[..., 1:], axis=-1) + 1
    s0 = jnp.take_along_axis(obj_scores, rel_pair_idxs[..., 0], axis=1)
    s1 = jnp.take_along_axis(obj_scores, rel_pair_idxs[..., 1], axis=1)
    rel_prob = jax.nn.softmax(rel_logits, axis=-1)
    rel_scores = jnp.max(rel_prob[..., 1:], axis=-1)
    rel_class = jnp.argmax(rel_prob[..., 1:], axis=-1) + 1
    triple = rel_scores * s0 * s1
    order = jnp.argsort(-triple, axis=1)
    return {
        "scores": obj_scores,
        "pred_classes": obj_pred.astype(jnp.int32),
        "rel_pair_idxs": jnp.take_along_axis(rel_pair_idxs, order[..., None], axis=1),
        "rel_scores": jnp.take_along_axis(rel_prob, order[..., None], axis=1),
        "pred_rel_labels": jnp.take_along_axis(rel_class, order, axis=1).astype(jnp.int32),
    }


if __name__ == "__main__":
    key = jax.random.PRNGKey(0)
    B, N_OBJ, C_OBJ = 2, 8, 32      # images, boxes per image, object classes (incl. background)
    N_REL, C_REL = 8, 16            # relation pairs per image, predicate classes (incl. "no relation")

    k1, k2, k3, k4 = jax.random.split(key, 4)
    obj_logits = jax.random.normal(k1, (B, N_OBJ, C_OBJ), dtype=jnp.float32)
    rel_logits = jax.random.normal(k2, (B, N_REL, C_REL), dtype=jnp.float32)
    subj = jax.random.randint(k3, (B, N_REL, 1), 0, N_OBJ, dtype=jnp.int32)
    obj = jax.random.randint(k4, (B, N_REL, 1), 0, N_OBJ, dtype=jnp.int32)
    rel_pair_idxs = jnp.concatenate([subj, obj], axis=-1)

    out = jax.block_until_ready(post_process(rel_logits, obj_logits, rel_pair_idxs))
    ref = jax.block_until_ready(_reference(rel_logits, obj_logits, rel_pair_idxs))

    np.testing.assert_allclose(np.asarray(out["scores"]), np.asarray(ref["scores"]), rtol=1e-5, atol=1e-6)
    np.testing.assert_array_equal(np.asarray(out["pred_classes"]), np.asarray(ref["pred_classes"]))
    np.testing.assert_array_equal(np.asarray(out["rel_pair_idxs"]), np.asarray(ref["rel_pair_idxs"]))
    np.testing.assert_allclose(np.asarray(out["rel_scores"]), np.asarray(ref["rel_scores"]), rtol=1e-5, atol=1e-6)
    np.testing.assert_array_equal(np.asarray(out["pred_rel_labels"]), np.asarray(ref["pred_rel_labels"]))

    print("KERNEL_OK")
</pallas_src>

<mosaic_0001>
module attributes {stable_mosaic.version = 11 : i64} {
  func.func @_fused_kernel(%arg0: i32, %arg1: memref<1x8x32xf32, #tpu.memory_space<vmem>>, %arg2: memref<1x16x8xf32, #tpu.memory_space<vmem>>, %arg3: memref<1x1x8xi32, #tpu.memory_space<vmem>>, %arg4: memref<1x1x8xi32, #tpu.memory_space<vmem>>, %arg5: memref<1x1x8xf32, #tpu.memory_space<vmem>>, %arg6: memref<1x1x8xi32, #tpu.memory_space<vmem>>, %arg7: memref<1x16x8xf32, #tpu.memory_space<vmem>>, %arg8: memref<1x1x8xi32, #tpu.memory_space<vmem>>, %arg9: memref<1x1x8xf32, #tpu.memory_space<vmem>>) attributes {dimension_semantics = [#tpu.dimension_semantics<parallel>], iteration_bounds = array<i64: 2>, scalar_prefetch = 0 : i64, scratch_operands = 0 : i64, tpu.core_type = #tpu.core_type<tc>, window_params = [{transform_indices = @transform_0, window_bounds = array<i64: 1, 8, 32>}, {transform_indices = @transform_1, window_bounds = array<i64: 1, 16, 8>}, {transform_indices = @transform_2, window_bounds = array<i64: 1, 1, 8>}, {transform_indices = @transform_3, window_bounds = array<i64: 1, 1, 8>}, {transform_indices = @transform_4, window_bounds = array<i64: 1, 1, 8>}, {transform_indices = @transform_5, window_bounds = array<i64: 1, 1, 8>}, {transform_indices = @transform_6, window_bounds = array<i64: 1, 16, 8>}, {transform_indices = @transform_7, window_bounds = array<i64: 1, 1, 8>}, {transform_indices = @transform_8, window_bounds = array<i64: 1, 1, 8>}]} {
    %c0 = arith.constant 0 : index
    %c0_0 = arith.constant 0 : index
    %c0_1 = arith.constant 0 : index
    %0 = vector.load %arg1[%c0, %c0_0, %c0_1] : memref<1x8x32xf32, #tpu.memory_space<vmem>>, vector<1x8x32xf32>
    %1 = vector.shape_cast %0 : vector<1x8x32xf32> to vector<8x32xf32>
    %2 = tpu.iota {dimensions = array<i32: 1>} : vector<8x32xi32>
    %cst = arith.constant dense<0xFF800000> : vector<8xf32>
    %3 = vector.multi_reduction <maximumf>, %1, %cst [1] : vector<8x32xf32> to vector<8xf32>
    %4 = vector.shape_cast %3 : vector<8xf32> to vector<8x1xf32>
    %5 = vector.broadcast %4 : vector<8x1xf32> to vector<8x32xf32>
    %6 = arith.subf %1, %5 : vector<8x32xf32>
    %7 = math.exp %6 : vector<8x32xf32>
    %cst_2 = arith.constant dense<0.000000e+00> : vector<8xf32>
    %8 = vector.multi_reduction <add>, %7, %cst_2 [1] : vector<8x32xf32> to vector<8xf32>
    %9 = vector.shape_cast %8 : vector<8xf32> to vector<8x1xf32>
    %10 = tpu.reciprocal %9 : vector<8x1xf32> -> vector<8x1xf32>
    %c0_i32 = arith.constant 0 : i32
    %11 = vector.broadcast %c0_i32 : i32 to vector<8x32xi32>
    %12 = arith.cmpi eq, %2, %11 : vector<8x32xi32>
    %cst_3 = arith.constant 0xFF800000 : f32
    %13 = vector.broadcast %cst_3 : f32 to vector<8x32xf32>
    %14 = arith.select %12, %13, %1 : vector<8x32xi1>, vector<8x32xf32>
    %cst_4 = arith.constant dense<0xFF800000> : vector<8xf32>
    %15 = vector.multi_reduction <maximumf>, %14, %cst_4 [1] : vector<8x32xf32> to vector<8xf32>
    %16 = vector.shape_cast %15 : vector<8xf32> to vector<8x1xf32>
    %17 = arith.subf %16, %4 : vector<8x1xf32>
    %18 = math.exp %17 : vector<8x1xf32>
    %19 = arith.mulf %18, %10 : vector<8x1xf32>
    %20 = vector.broadcast %16 : vector<8x1xf32> to vector<8x32xf32>
    %21 = arith.cmpf oeq, %14, %20 : vector<8x32xf32>
    %c32_i32 = arith.constant 32 : i32
    %22 = vector.broadcast %c32_i32 : i32 to vector<8x32xi32>
    %23 = arith.subi %22, %2 : vector<8x32xi32>
    %c0_i32_5 = arith.constant 0 : i32
    %24 = vector.broadcast %c0_i32_5 : i32 to vector<8x32xi32>
    %25 = arith.select %21, %23, %24 : vector<8x32xi1>, vector<8x32xi32>
    %cst_6 = arith.constant dense<-2147483648> : vector<8xi32>
    %26 = vector.multi_reduction <maxsi>, %25, %cst_6 [1] : vector<8x32xi32> to vector<8xi32>
    %27 = vector.shape_cast %26 : vector<8xi32> to vector<8x1xi32>
    %c32_i32_7 = arith.constant 32 : i32
    %28 = vector.broadcast %c32_i32_7 : i32 to vector<8x1xi32>
    %29 = arith.subi %28, %27 : vector<8x1xi32>
    %30 = tpu.iota {dimensions = array<i32: 0>} : vector<8x8xi32>
    %31 = tpu.iota {dimensions = array<i32: 1>} : vector<8x8xi32>
    %32 = arith.cmpi eq, %30, %31 : vector<8x8xi32>
    %cst_8 = arith.constant 0.000000e+00 : f32
    %33 = vector.shape_cast %19 : vector<8x1xf32> to vector<8x1xf32>
    %34 = vector.broadcast %33 : vector<8x1xf32> to vector<8x8xf32>
    %35 = vector.broadcast %cst_8 : f32 to vector<8x8xf32>
    %36 = arith.select %32, %34, %35 : vector<8x8xi1>, vector<8x8xf32>
    %cst_9 = arith.constant dense<0.000000e+00> : vector<8xf32>
    %37 = vector.multi_reduction <add>, %36, %cst_9 [0] : vector<8x8xf32> to vector<8xf32>
    %38 = vector.shape_cast %37 : vector<8xf32> to vector<1x8xf32>
    %c0_10 = arith.constant 0 : index
    %c0_11 = arith.constant 0 : index
    %c0_12 = arith.constant 0 : index
    %39 = vector.load %arg5[%c0_10, %c0_11, %c0_12] : memref<1x1x8xf32, #tpu.memory_space<vmem>>, vector<1x1x8xf32>
    %40 = vector.shape_cast %39 : vector<1x1x8xf32> to vector<1x8xf32>
    %41 = vector.shape_cast %38 : vector<1x8xf32> to vector<1x1x8xf32>
    tpu.vector_store %arg5[%c0_10, %c0_11, %c0_12], %41 {strides = array<i32>} : memref<1x1x8xf32, #tpu.memory_space<vmem>>, vector<1x1x8xf32>,
    %c0_i32_13 = arith.constant 0 : i32
    %42 = vector.shape_cast %29 : vector<8x1xi32> to vector<8x1xi32>
    %43 = vector.broadcast %42 : vector<8x1xi32> to vector<8x8xi32>
    %44 = vector.broadcast %c0_i32_13 : i32 to vector<8x8xi32>
    %45 = arith.select %32, %43, %44 : vector<8x8xi1>, vector<8x8xi32>
    %cst_14 = arith.constant dense<0> : vector<8xi32>
    %46 = vector.multi_reduction <add>, %45, %cst_14 [0] : vector<8x8xi32> to vector<8xi32>
    %47 = vector.shape_cast %46 : vector<8xi32> to vector<1x8xi32>
    %c0_15 = arith.constant 0 : index
    %c0_16 = arith.constant 0 : index
    %c0_17 = arith.constant 0 : index
    %48 = vector.load %arg6[%c0_15, %c0_16, %c0_17] : memref<1x1x8xi32, #tpu.memory_space<vmem>>, vector<1x1x8xi32>
    %49 = vector.shape_cast %48 : vector<1x1x8xi32> to vector<1x8xi32>
    %50 = vector.shape_cast %47 : vector<1x8xi32> to vector<1x1x8xi32>
    tpu.vector_store %arg6[%c0_15, %c0_16, %c0_17], %50 {strides = array<i32>} : memref<1x1x8xi32, #tpu.memory_space<vmem>>, vector<1x1x8xi32>,
    %c0_18 = arith.constant 0 : index
    %c0_19 = arith.constant 0 : index
    %c0_20 = arith.constant 0 : index
    %51 = vector.load %arg3[%c0_18, %c0_19, %c0_20] : memref<1x1x8xi32, #tpu.memory_space<vmem>>, vector<1x1x8xi32>
    %52 = vector.shape_cast %51 : vector<1x1x8xi32> to vector<1x8xi32>
    %c0_21 = arith.constant 0 : index
    %c0_22 = arith.constant 0 : index
    %c0_23 = arith.constant 0 : index
    %53 = vector.load %arg4[%c0_21, %c0_22, %c0_23] : memref<1x1x8xi32, #tpu.memory_space<vmem>>, vector<1x1x8xi32>
    %54 = vector.shape_cast %53 : vector<1x1x8xi32> to vector<1x8xi32>
    %55 = tpu.iota {dimensions = array<i32: 0>} : vector<8x8xi32>
    %56 = vector.broadcast %52 : vector<1x8xi32> to vector<8x8xi32>
    %57 = arith.cmpi eq, %55, %56 : vector<8x8xi32>
    %cst_24 = arith.constant 0.000000e+00 : f32
    %58 = vector.shape_cast %19 : vector<8x1xf32> to vector<8x1xf32>
    %59 = vector.broadcast %58 : vector<8x1xf32> to vector<8x8xf32>
    %60 = vector.broadcast %cst_24 : f32 to vector<8x8xf32>
    %61 = arith.select %57, %59, %60 : vector<8x8xi1>, vector<8x8xf32>
    %cst_25 = arith.constant dense<0.000000e+00> : vector<8xf32>
    %62 = vector.multi_reduction <add>, %61, %cst_25 [0] : vector<8x8xf32> to vector<8xf32>
    %63 = vector.shape_cast %62 : vector<8xf32> to vector<1x8xf32>
    %64 = vector.broadcast %54 : vector<1x8xi32> to vector<8x8xi32>
    %65 = arith.cmpi eq, %55, %64 : vector<8x8xi32>
    %cst_26 = arith.constant 0.000000e+00 : f32
    %66 = vector.shape_cast %19 : vector<8x1xf32> to vector<8x1xf32>
    %67 = vector.broadcast %66 : vector<8x1xf32> to vector<8x8xf32>
    %68 = vector.broadcast %cst_26 : f32 to vector<8x8xf32>
    %69 = arith.select %65, %67, %68 : vector<8x8xi1>, vector<8x8xf32>
    %cst_27 = arith.constant dense<0.000000e+00> : vector<8xf32>
    %70 = vector.multi_reduction <add>, %69, %cst_27 [0] : vector<8x8xf32> to vector<8xf32>
    %71 = vector.shape_cast %70 : vector<8xf32> to vector<1x8xf32>
    %c0_28 = arith.constant 0 : index
    %c0_29 = arith.constant 0 : index
    %c0_30 = arith.constant 0 : index
    %72 = vector.load %arg2[%c0_28, %c0_29, %c0_30] : memref<1x16x8xf32, #tpu.memory_space<vmem>>, vector<1x16x8xf32>
    %73 = vector.shape_cast %72 : vector<1x16x8xf32> to vector<16x8xf32>
    %74 = tpu.iota {dimensions = array<i32: 0>} : vector<16x8xi32>
    %cst_31 = arith.constant dense<0xFF800000> : vector<8xf32>
    %75 = vector.multi_reduction <maximumf>, %73, %cst_31 [0] : vector<16x8xf32> to vector<8xf32>
    %76 = vector.shape_cast %75 : vector<8xf32> to vector<1x8xf32>
    %77 = vector.broadcast %76 : vector<1x8xf32> to vector<16x8xf32>
    %78 = arith.subf %73, %77 : vector<16x8xf32>
    %79 = math.exp %78 : vector<16x8xf32>
    %cst_32 = arith.constant dense<0.000000e+00> : vector<8xf32>
    %80 = vector.multi_reduction <add>, %79, %cst_32 [0] : vector<16x8xf32> to vector<8xf32>
    %81 = vector.shape_cast %80 : vector<8xf32> to vector<1x8xf32>
    %82 = tpu.reciprocal %81 : vector<1x8xf32> -> vector<1x8xf32>
    %83 = vector.broadcast %82 : vector<1x8xf32> to vector<16x8xf32>
    %84 = arith.mulf %79, %83 : vector<16x8xf32>
    %c0_33 = arith.constant 0 : index
    %c0_34 = arith.constant 0 : index
    %c0_35 = arith.constant 0 : index
    %85 = vector.load %arg7[%c0_33, %c0_34, %c0_35] : memref<1x16x8xf32, #tpu.memory_space<vmem>>, vector<1x16x8xf32>
    %86 = vector.shape_cast %85 : vector<1x16x8xf32> to vector<16x8xf32>
    %87 = vector.shape_cast %84 : vector<16x8xf32> to vector<1x16x8xf32>
    tpu.vector_store %arg7[%c0_33, %c0_34, %c0_35], %87 {strides = array<i32>} : memref<1x16x8xf32, #tpu.memory_space<vmem>>, vector<1x16x8xf32>,
    %c0_i32_36 = arith.constant 0 : i32
    %88 = vector.broadcast %c0_i32_36 : i32 to vector<16x8xi32>
    %89 = arith.cmpi eq, %74, %88 : vector<16x8xi32>
    %cst_37 = arith.constant 0xFF800000 : f32
    %90 = vector.broadcast %cst_37 : f32 to vector<16x8xf32>
    %91 = arith.select %89, %90, %73 : vector<16x8xi1>, vector<16x8xf32>
    %cst_38 = arith.constant dense<0xFF800000> : vector<8xf32>
    %92 = vector.multi_reduction <maximumf>, %91, %cst_38 [0] : vector<16x8xf32> to vector<8xf32>
    %93 = vector.shape_cast %92 : vector<8xf32> to vector<1x8xf32>
    %94 = arith.subf %93, %76 : vector<1x8xf32>
    %95 = math.exp %94 : vector<1x8xf32>
    %96 = arith.mulf %95, %82 : vector<1x8xf32>
    %97 = vector.broadcast %93 : vector<1x8xf32> to vector<16x8xf32>
    %98 = arith.cmpf oeq, %91, %97 : vector<16x8xf32>
    %c16_i32 = arith.constant 16 : i32
    %99 = vector.broadcast %c16_i32 : i32 to vector<16x8xi32>
    %100 = arith.subi %99, %74 : vector<16x8xi32>
    %c0_i32_39 = arith.constant 0 : i32
    %101 = vector.broadcast %c0_i32_39 : i32 to vector<16x8xi32>
    %102 = arith.select %98, %100, %101 : vector<16x8xi1>, vector<16x8xi32>
    %cst_40 = arith.constant dense<-2147483648> : vector<8xi32>
    %103 = vector.multi_reduction <maxsi>, %102, %cst_40 [0] : vector<16x8xi32> to vector<8xi32>
    %104 = vector.shape_cast %103 : vector<8xi32> to vector<1x8xi32>
    %c16_i32_41 = arith.constant 16 : i32
    %105 = vector.broadcast %c16_i32_41 : i32 to vector<1x8xi32>
    %106 = arith.subi %105, %104 : vector<1x8xi32>
    %c0_42 = arith.constant 0 : index
    %c0_43 = arith.constant 0 : index
    %c0_44 = arith.constant 0 : index
    %107 = vector.load %arg8[%c0_42, %c0_43, %c0_44] : memref<1x1x8xi32, #tpu.memory_space<vmem>>, vector<1x1x8xi32>
    %108 = vector.shape_cast %107 : vector<1x1x8xi32> to vector<1x8xi32>
    %109 = vector.shape_cast %106 : vector<1x8xi32> to vector<1x1x8xi32>
    tpu.vector_store %arg8[%c0_42, %c0_43, %c0_44], %109 {strides = array<i32>} : memref<1x1x8xi32, #tpu.memory_space<vmem>>, vector<1x1x8xi32>,
    %110 = arith.mulf %96, %63 : vector<1x8xf32>
    %111 = arith.mulf %110, %71 : vector<1x8xf32>
    %c0_45 = arith.constant 0 : index
    %c0_46 = arith.constant 0 : index
    %c0_47 = arith.constant 0 : index
    %112 = vector.load %arg9[%c0_45, %c0_46, %c0_47] : memref<1x1x8xf32, #tpu.memory_space<vmem>>, vector<1x1x8xf32>
    %113 = vector.shape_cast %112 : vector<1x1x8xf32> to vector<1x8xf32>
    %114 = vector.shape_cast %111 : vector<1x8xf32> to vector<1x1x8xf32>
    tpu.vector_store %arg9[%c0_45, %c0_46, %c0_47], %114 {strides = array<i32>} : memref<1x1x8xf32, #tpu.memory_space<vmem>>, vector<1x1x8xf32>,
    return
  }
  func.func @transform_0(%arg0: i32) -> (i32, i32, i32) {
    %c0_i32 = arith.constant 0 : i32
    %c0_i32_0 = arith.constant 0 : i32
    %c0_i32_1 = arith.constant 0 : i32
    return %arg0, %c0_i32, %c0_i32_0 : i32, i32, i32
  }
  func.func @transform_1(%arg0: i32) -> (i32, i32, i32) {
    %c0_i32 = arith.constant 0 : i32
    %c0_i32_0 = arith.constant 0 : i32
    %c0_i32_1 = arith.constant 0 : i32
    return %arg0, %c0_i32, %c0_i32_0 : i32, i32, i32
  }
  func.func @transform_2(%arg0: i32) -> (i32, i32, i32) {
    %c0_i32 = arith.constant 0 : i32
    %c0_i32_0 = arith.constant 0 : i32
    %c0_i32_1 = arith.constant 0 : i32
    return %arg0, %c0_i32, %c0_i32_0 : i32, i32, i32
  }
  func.func @transform_3(%arg0: i32) -> (i32, i32, i32) {
    %c0_i32 = arith.constant 0 : i32
    %c0_i32_0 = arith.constant 0 : i32
    %c0_i32_1 = arith.constant 0 : i32
    return %arg0, %c0_i32, %c0_i32_0 : i32, i32, i32
  }
  func.func @transform_4(%arg0: i32) -> (i32, i32, i32) {
    %c0_i32 = arith.constant 0 : i32
    %c0_i32_0 = arith.constant 0 : i32
    %c0_i32_1 = arith.constant 0 : i32
    return %arg0, %c0_i32, %c0_i32_0 : i32, i32, i32
  }
  func.func @transform_5(%arg0: i32) -> (i32, i32, i32) {
    %c0_i32 = arith.constant 0 : i32
    %c0_i32_0 = arith.constant 0 : i32
    %c0_i32_1 = arith.constant 0 : i32
    return %arg0, %c0_i32, %c0_i32_0 : i32, i32, i32
  }
  func.func @transform_6(%arg0: i32) -> (i32, i32, i32) {
    %c0_i32 = arith.constant 0 : i32
    %c0_i32_0 = arith.constant 0 : i32
    %c0_i32_1 = arith.constant 0 : i32
    return %arg0, %c0_i32, %c0_i32_0 : i32, i32, i32
  }
  func.func @transform_7(%arg0: i32) -> (i32, i32, i32) {
    %c0_i32 = arith.constant 0 : i32
    %c0_i32_0 = arith.constant 0 : i32
    %c0_i32_1 = arith.constant 0 : i32
    return %arg0, %c0_i32, %c0_i32_0 : i32, i32, i32
  }
  func.func @transform_8(%arg0: i32) -> (i32, i32, i32) {
    %c0_i32 = arith.constant 0 : i32
    %c0_i32_0 = arith.constant 0 : i32
    %c0_i32_1 = arith.constant 0 : i32
    return %arg0, %c0_i32, %c0_i32_0 : i32, i32, i32
  }
}

</mosaic_0001>

<llo_original>
// kernel: tpu_custom_call.1
$region0: #{tpu_custom_call.1}
  #allocation0 [shape = 'u32[]', space=smem, size = 0x4, offset = 0x4, fixed_abs, tag = 'smem constant byte address 0x4 - core index']
  #allocation1 [shape = 'u32[144,128]{1,0:T(1,128)}', space=vmem, size = 0x12000, scoped, tag = 'internal scratch']
  %s0 = inlined_call_operand.vmem [shape: f32[2,8,32], index: 0, kind: input, shape index: {}]
  %s1 = inlined_call_operand.vmem [shape: f32[2,16,8], index: 1, kind: input, shape index: {}]
  %s2 = inlined_call_operand.vmem [shape: s32[2,1,8], index: 2, kind: input, shape index: {}]
  %s3 = inlined_call_operand.vmem [shape: s32[2,1,8], index: 3, kind: input, shape index: {}]
  %s4 = inlined_call_operand.hbm [shape: f32[2,1,8], index: 4, kind: output, shape index: {0}]
  %s5 = inlined_call_operand.hbm [shape: s32[2,1,8], index: 5, kind: output, shape index: {1}]
  %s6 = inlined_call_operand.vmem [shape: f32[2,16,8], index: 6, kind: output, shape index: {2}]
  %s7 = inlined_call_operand.hbm [shape: s32[2,1,8], index: 7, kind: output, shape index: {3}]
  %s8 = inlined_call_operand.hbm [shape: f32[2,1,8], index: 8, kind: output, shape index: {4}]
  %9 = xla_tuple %s4, %s5, %s6, %s7, %s8
  %s10 = sld [smem:[#allocation0]]
  $region81: #{tpu_custom_call.1} parent=0
    _
  %s12 = ssub.s32 1, %s10
  %s13 = scalar_select 0, %s12, %s10
  $region1: #{tpu_custom_call.1} parent=0
    #allocation2 [shape = 'u8[1024]{0}', space=vmem, size = 0x400, scoped, tag = 'output window, operand 0']
    #allocation3 [shape = 's32[2]{0}', space=sflag, size = 0x8, scoped, tag = 'scoped memory for tpu_custom_call.1']
    #allocation4 [shape = 'u8[1024]{0}', space=vmem, size = 0x400, scoped, tag = 'output window, operand 1']
    #allocation5 [shape = 's32[2]{0}', space=sflag, size = 0x8, scoped, tag = 'scoped memory for tpu_custom_call.1']
    #allocation6 [shape = 'u8[1024]{0}', space=vmem, size = 0x400, scoped, tag = 'output window, operand 3']
    #allocation7 [shape = 'u8[1024]{0}', space=vmem, size = 0x400, scoped, tag = 'output window, operand 4']
    #allocation8 [shape = 's32[2]{0}', space=sflag, size = 0x8, scoped, tag = 'scoped memory for tpu_custom_call.1']
    %14 = vsyncpa [#allocation3], 0
    %s15 = scalar_lea.sflag [#allocation3], 1
    %16 = vsyncpa %s15, 0
    %17 = vsyncpa [#allocation5], 0
    %s18 = scalar_lea.sflag [#allocation5], 1
    %19 = vsyncpa %s18, 0
    %20 = vsyncpa [#allocation8], 0
    %s21 = scalar_lea.sflag [#allocation8], 1
    %22 = vsyncpa %s21, 0
    loop: start=0, step=1, limit=4
    $region2: #{tpu_custom_call.1} parent=1 // loop_pre_header
      _
    $region3: #{tpu_custom_call.1} parent=1 // loop_header
      %s24 = sphi 0, %s28
      %p25 = scmp.ge.s32.totalorder %s24, 4
      %s34 = sphi 0, %s36
      %s37 = sphi 0, %s34
      %s38 = sphi 0, %s37
      %s54 = sphi 0, %s38
      %s60 = sphi 0, %s62
      %s63 = sphi 0, %s60
      %s64 = sphi 0, %s63
      %s80 = sphi 0, %s64
      %s86 = sphi 0, %s88
      %s89 = sphi 0, %s86
      %s90 = sphi 0, %s89
      %s106 = sphi 0, %s90
      %s112 = sphi 0, %s114
      %s115 = sphi 0, %s112
      %s116 = sphi 0, %s115
      %s132 = sphi 0, %s116
      %s138 = sphi 0, %s140
      %s141 = sphi 0, %s138
      %s142 = sphi 0, %s141
      %s158 = sphi 0, %s142
      %s164 = sphi 0, %s166
      %s167 = sphi 0, %s164
      %s168 = sphi 0, %s167
      %s184 = sphi 0, %s168
      %s190 = sphi 0, %s192
      %s193 = sphi 0, %s190
      %s194 = sphi 0, %s193
      %s210 = sphi 0, %s194
      %s216 = sphi 0, %s218
      %s219 = sphi 0, %s216
      %s220 = sphi 0, %s219
      %s236 = sphi 0, %s220
      %s242 = sphi 0, %s244
      %s245 = sphi 0, %s242
      %s246 = sphi 0, %s245
      %s262 = sphi 0, %s246
    $region4: #{tpu_custom_call.1} parent=1 // loop_header_branch
      %27 = sbr.rel (%p25) target = $region8
    $region5: #{tpu_custom_call.1} parent=1 // loop_body
      %s29 = ssub.s32 %s24, 1
      %s30 = ssub.s32 %s24, 2
      %s31 = sadd.s32 %s24, 1
      %s32 = ssub.s32 %s24, %s31
      %p33 = scmp.eq.s32.totalorder %s32, 0
      %s35 = sadd.s32 %s34, 1
      %s36 = scalar_select %p33, %s34, %s35
      %p39 = pneg %p33
      %p40 = scmp.eq.s32.totalorder %s24, 1
      %p41 = por %p39, %p40
      %p42 = scmp.ne.s32.totalorder %s34, %s37
      %p43 = scmp.eq.s32.totalorder %s24, 0
      %p44 = por %p42, %p43
      %p45 = scmp.ne.s32.totalorder %s34, %s37
      %p46 = scmp.eq.s32.totalorder %s29, 1
      %p47 = por %p45, %p46
      %p48 = scmp.ne.s32.totalorder %s37, %s38
      %p49 = scmp.eq.s32.totalorder %s29, 0
      %p50 = por %p48, %p49
      %p51 = scmp.ne.s32.totalorder %s37, %s38
      %p52 = scmp.eq.s32.totalorder %s30, 1
      %p53 = por %p51, %p52
      %p55 = scmp.ne.s32.totalorder %s38, %s54
      %p56 = scmp.eq.s32.totalorder %s30, 0
      %p57 = por %p55, %p56
      %s58 = ssub.s32 %s24, %s31
      %p59 = scmp.eq.s32.totalorder %s58, 0
      %s61 = sadd.s32 %s60, 1
      %s62 = scalar_select %p59, %s60, %s61
      %p65 = pneg %p59
      %p66 = scmp.eq.s32.totalorder %s24, 1
      %p67 = por %p65, %p66
      %p68 = scmp.ne.s32.totalorder %s60, %s63
      %p69 = scmp.eq.s32.totalorder %s24, 0
      %p70 = por %p68, %p69
      %p71 = scmp.ne.s32.totalorder %s60, %s63
      %p72 = scmp.eq.s32.totalorder %s29, 1
      %p73 = por %p71, %p72
      %p74 = scmp.ne.s32.totalorder %s63, %s64
      %p75 = scmp.eq.s32.totalorder %s29, 0
      %p76 = por %p74, %p75
      %p77 = scmp.ne.s32.totalorder %s63, %s64
      %p78 = scmp.eq.s32.totalorder %s30, 1
      %p79 = por %p77, %p78
      %p81 = scmp.ne.s32.totalorder %s64, %s80
      %p82 = scmp.eq.s32.totalorder %s30, 0
      %p83 = por %p81, %p82
      %s84 = ssub.s32 %s24, %s31
      %p85 = scmp.eq.s32.totalorder %s84, 0
      %s87 = sadd.s32 %s86, 1
      %s88 = scalar_select %p85, %s86, %s87
      %p91 = pneg %p85
      %p92 = scmp.eq.s32.totalorder %s24, 1
      %p93 = por %p91, %p92
      %p94 = scmp.ne.s32.totalorder %s86, %s89
      %p95 = scmp.eq.s32.totalorder %s24, 0
      %p96 = por %p94, %p95
      %p97 = scmp.ne.s32.totalorder %s86, %s89
      %p98 = scmp.eq.s32.totalorder %s29, 1
      %p99 = por %p97, %p98
      %p100 = scmp.ne.s32.totalorder %s89, %s90
      %p101 = scmp.eq.s32.totalorder %s29, 0
      %p102 = por %p100, %p101
      %p103 = scmp.ne.s32.totalorder %s89, %s90
      %p104 = scmp.eq.s32.totalorder %s30, 1
      %p105 = por %p103, %p104
      %p107 = scmp.ne.s32.totalorder %s90, %s106
      %p108 = scmp.eq.s32.totalorder %s30, 0
      %p109 = por %p107, %p108
      %s110 = ssub.s32 %s24, %s31
      %p111 = scmp.eq.s32.totalorder %s110, 0
      %s113 = sadd.s32 %s112, 1
      %s114 = scalar_select %p111, %s112, %s113
      %p117 = pneg %p111
      %p118 = scmp.eq.s32.totalorder %s24, 1
      %p119 = por %p117, %p118
      %p120 = scmp.ne.s32.totalorder %s112, %s115
      %p121 = scmp.eq.s32.totalorder %s24, 0
      %p122 = por %p120, %p121
      %p123 = scmp.ne.s32.totalorder %s112, %s115
      %p124 = scmp.eq.s32.totalorder %s29, 1
      %p125 = por %p123, %p124
      %p126 = scmp.ne.s32.totalorder %s115, %s116
      %p127 = scmp.eq.s32.totalorder %s29, 0
      %p128 = por %p126, %p127
      %p129 = scmp.ne.s32.totalorder %s115, %s116
      %p130 = scmp.eq.s32.totalorder %s30, 1
      %p131 = por %p129, %p130
      %p133 = scmp.ne.s32.totalorder %s116, %s132
      %p134 = scmp.eq.s32.totalorder %s30, 0
      %p135 = por %p133, %p134
      %s136 = ssub.s32 %s24, %s31
      %p137 = scmp.eq.s32.totalorder %s136, 0
      %s139 = sadd.s32 %s138, 1
      %s140 = scalar_select %p137, %s138, %s139
      %p143 = pneg %p137
      %p144 = scmp.eq.s32.totalorder %s24, 1
      %p145 = por %p143, %p144
      %p146 = scmp.ne.s32.totalorder %s138, %s141
      %p147 = scmp.eq.s32.totalorder %s24, 0
      %p148 = por %p146, %p147
      %p149 = scmp.ne.s32.totalorder %s138, %s141
      %p150 = scmp.eq.s32.totalorder %s29, 1
      %p151 = por %p149, %p150
      %p152 = scmp.ne.s32.totalorder %s141, %s142
      %p153 = scmp.eq.s32.totalorder %s29, 0
      %p154 = por %p152, %p153
      %p155 = scmp.ne.s32.totalorder %s141, %s142
      %p156 = scmp.eq.s32.totalorder %s30, 1
      %p157 = por %p155, %p156
      %p159 = scmp.ne.s32.totalorder %s142, %s158
      %p160 = scmp.eq.s32.totalorder %s30, 0
      %p161 = por %p159, %p160
      %s162 = ssub.s32 %s24, %s31
      %p163 = scmp.eq.s32.totalorder %s162, 0
      %s165 = sadd.s32 %s164, 1
      %s166 = scalar_select %p163, %s164, %s165
      %p169 = pneg %p163
      %p170 = scmp.eq.s32.totalorder %s24, 1
      %p171 = por %p169, %p170
      %p172 = scmp.ne.s32.totalorder %s164, %s167
      %p173 = scmp.eq.s32.totalorder %s24, 0
      %p174 = por %p172, %p173
      %p175 = scmp.ne.s32.totalorder %s164, %s167
      %p176 = scmp.eq.s32.totalorder %s29, 1
      %p177 = por %p175, %p176
      %p178 = scmp.ne.s32.totalorder %s167, %s168
      %p179 = scmp.eq.s32.totalorder %s29, 0
      %p180 = por %p178, %p179
      %p181 = scmp.ne.s32.totalorder %s167, %s168
      %p182 = scmp.eq.s32.totalorder %s30, 1
      %p183 = por %p181, %p182
      %p185 = scmp.ne.s32.totalorder %s168, %s184
      %p186 = scmp.eq.s32.totalorder %s30, 0
      %p187 = por %p185, %p186
      %s188 = ssub.s32 %s24, %s31
      %p189 = scmp.eq.s32.totalorder %s188, 0
      %s191 = sadd.s32 %s190, 1
      %s192 = scalar_select %p189, %s190, %s191
      %p195 = pneg %p189
      %p196 = scmp.eq.s32.totalorder %s24, 1
      %p197 = por %p195, %p196
      %p198 = scmp.ne.s32.totalorder %s190, %s193
      %p199 = scmp.eq.s32.totalorder %s24, 0
      %p200 = por %p198, %p199
      %p201 = scmp.ne.s32.totalorder %s190, %s193
      %p202 = scmp.eq.s32.totalorder %s29, 1
      %p203 = por %p201, %p202
      %p204 = scmp.ne.s32.totalorder %s193, %s194
      %p205 = scmp.eq.s32.totalorder %s29, 0
      %p206 = por %p204, %p205
      %p207 = scmp.ne.s32.totalorder %s193, %s194
      %p208 = scmp.eq.s32.totalorder %s30, 1
      %p209 = por %p207, %p208
      %p211 = scmp.ne.s32.totalorder %s194, %s210
      %p212 = scmp.eq.s32.totalorder %s30, 0
      %p213 = por %p211, %p212
      %s214 = ssub.s32 %s24, %s31
      %p215 = scmp.eq.s32.totalorder %s214, 0
      %s217 = sadd.s32 %s216, 1
      %s218 = scalar_select %p215, %s216, %s217
      %p221 = pneg %p215
      %p222 = scmp.eq.s32.totalorder %s24, 1
      %p223 = por %p221, %p222
      %p224 = scmp.ne.s32.totalorder %s216, %s219
      %p225 = scmp.eq.s32.totalorder %s24, 0
      %p226 = por %p224, %p225
      %p227 = scmp.ne.s32.totalorder %s216, %s219
      %p228 = scmp.eq.s32.totalorder %s29, 1
      %p229 = por %p227, %p228
      %p230 = scmp.ne.s32.totalorder %s219, %s220
      %p231 = scmp.eq.s32.totalorder %s29, 0
      %p232 = por %p230, %p231
      %p233 = scmp.ne.s32.totalorder %s219, %s220
      %p234 = scmp.eq.s32.totalorder %s30, 1
      %p235 = por %p233, %p234
      %p237 = scmp.ne.s32.totalorder %s220, %s236
      %p238 = scmp.eq.s32.totalorder %s30, 0
      %p239 = por %p237, %p238
      %s240 = ssub.s32 %s24, %s31
      %p241 = scmp.eq.s32.totalorder %s240, 0
      %s243 = sadd.s32 %s242, 1
      %s244 = scalar_select %p241, %s242, %s243
      %p247 = pneg %p241
      %p248 = scmp.eq.s32.totalorder %s24, 1
      %p249 = por %p247, %p248
      %p250 = scmp.ne.s32.totalorder %s242, %s245
      %p251 = scmp.eq.s32.totalorder %s24, 0
      %p252 = por %p250, %p251
      %p253 = scmp.ne.s32.totalorder %s242, %s245
      %p254 = scmp.eq.s32.totalorder %s29, 1
      %p255 = por %p253, %p254
      %p256 = scmp.ne.s32.totalorder %s245, %s246
      %p257 = scmp.eq.s32.totalorder %s29, 0
      %p258 = por %p256, %p257
      %p259 = scmp.ne.s32.totalorder %s245, %s246
      %p260 = scmp.eq.s32.totalorder %s30, 1
      %p261 = por %p259, %p260
      %p263 = scmp.ne.s32.totalorder %s246, %s262
      %p264 = scmp.eq.s32.totalorder %s30, 0
      %p265 = por %p263, %p264
      %p266 = scmp.le.s32.totalorder 1, %s24
      %p267 = scmp.lt.s32.totalorder %s24, 3
      %p268 = pnand %p266, %p267
      %p269 = pneg %p268
      // Predicated region
      $region9: #{tpu_custom_call.1} parent=5 // pred_check
        _
      $region10: #{tpu_custom_call.1} parent=5 // pred_check_branch
        %271 = sbr.rel (%p268) target = $region12
      $region11: #{tpu_custom_call.1} parent=5 // pred_region
        %s272 = ssub.s32 %s24, 1
      $region12: #{tpu_custom_call.1} parent=5 // pred_fallthru
        _
      %p273 = scmp.lt.s32.totalorder %s24, 2
      // Predicated region
      $region13: #{tpu_custom_call.1} parent=5 // pred_check
        %p274 = pneg %p273
      $region14: #{tpu_custom_call.1} parent=5 // pred_check_branch
        %276 = sbr.rel (%p274) target = $region16
      $region15: #{tpu_custom_call.1} parent=5 // pred_region
        // Predicated region
        $region17: #{tpu_custom_call.1} parent=15 // pred_check
          %p277 = pneg %p44
        $region18: #{tpu_custom_call.1} parent=15 // pred_check_branch
          %279 = sbr.rel (%p277) target = $region20
        $region19: #{tpu_custom_call.1} parent=15 // pred_region
          %p280 = scmp.lt.s32.totalorder %s24, 1
          %s281 = scalar_select %p280, %s24, 1
          %s282 = smul.addr %s281, 8
          %s283 = scalar_lea.vmem %s0, %s282
        $region20: #{tpu_custom_call.1} parent=15 // pred_fallthru
          _
        // Predicated region
        $region21: #{tpu_custom_call.1} parent=15 // pred_check
          %p284 = pneg %p70
        $region22: #{tpu_custom_call.1} parent=15 // pred_check_branch
          %286 = sbr.rel (%p284) target = $region24
        $region23: #{tpu_custom_call.1} parent=15 // pred_region
          %p287 = scmp.lt.s32.totalorder %s24, 1
          %s288 = scalar_select %p287, %s24, 1
          %s289 = smul.addr %s288, 2
          %s290 = smul.addr %s289, 8
          %s291 = scalar_lea.vmem %s1, %s290
        $region24: #{tpu_custom_call.1} parent=15 // pred_fallthru
          _
        // Predicated region
        $region25: #{tpu_custom_call.1} parent=15 // pred_check
          %p292 = pneg %p96
        $region26: #{tpu_custom_call.1} parent=15 // pred_check_branch
          %294 = sbr.rel (%p292) target = $region28
        $region27: #{tpu_custom_call.1} parent=15 // pred_region
          %p295 = scmp.lt.s32.totalorder %s24, 1
          %s296 = scalar_select %p295, %s24, 1
          %s297 = scalar_lea.vmem %s2, %s296
        $region28: #{tpu_custom_call.1} parent=15 // pred_fallthru
          _
        // Predicated region
        $region29: #{tpu_custom_call.1} parent=15 // pred_check
          %p298 = pneg %p122
        $region30: #{tpu_custom_call.1} parent=15 // pred_check_branch
          %300 = sbr.rel (%p298) target = $region32
        $region31: #{tpu_custom_call.1} parent=15 // pred_region
          %p301 = scmp.lt.s32.totalorder %s24, 1
          %s302 = scalar_select %p301, %s24, 1
          %s303 = scalar_lea.vmem %s3, %s302
        $region32: #{tpu_custom_call.1} parent=15 // pred_fallthru
          _
      $region16: #{tpu_custom_call.1} parent=5 // pred_fallthru
        _
      %p304 = scmp.le.s32.totalorder 1, %s24
      %p305 = scmp.lt.s32.totalorder %s24, 3
      %p306 = pnand %p304, %p305
      %p307 = pneg %p306
      // Predicated region
      $region33: #{tpu_custom_call.1} parent=5 // pred_check
        _
      $region34: #{tpu_custom_call.1} parent=5 // pred_check_branch
        %309 = sbr.rel (%p306) target = $region36
      $region35: #{tpu_custom_call.1} parent=5 // pred_region
        %s310 = ssub.s32 %s24, 1
        %p311 = scmp.lt.s32.totalorder %s29, 1
        %s312 = scalar_select %p311, %s29, 1
        %s313 = smul.addr %s312, 8
        %s314 = scalar_lea.vmem %s0, %s313
        %p315 = pneg %p50
        %p316 = pneg %p47
        %p317 = scmp.lt.s32.totalorder %s29, 1
        %s318 = scalar_select %p317, %s29, 1
        %s319 = smul.addr %s318, 2
        %s320 = smul.addr %s319, 8
        %s321 = scalar_lea.vmem %s1, %s320
        %p322 = pneg %p76
        %p323 = pneg %p73
        %p324 = scmp.lt.s32.totalorder %s29, 1
        %s325 = scalar_select %p324, %s29, 1
        %s326 = scalar_lea.vmem %s2, %s325
        %p327 = pneg %p102
        %p328 = pneg %p99
        %p329 = scmp.lt.s32.totalorder %s29, 1
        %s330 = scalar_select %p329, %s29, 1
        %s331 = scalar_lea.vmem %s3, %s330
        %p332 = pneg %p128
        %p333 = pneg %p125
        %p334 = pneg %p154
        %p335 = pneg %p151
        %s336 = sand.u32 %s141, 1
        %s337 = scalar_lea.sflag [#allocation3], %s336
        %s338 = sand.u32 %s141, 1
        %s339 = scalar_lea.vmem [#allocation2], %s338
        %p340 = pneg %p180
        %p341 = pneg %p177
        %s342 = sand.u32 %s29, 1
        %s343 = scalar_lea.sflag [#allocation5], %s342
        %s344 = sand.u32 %s167, 1
        %s345 = scalar_lea.vmem [#allocation4], %s344
        %p346 = pneg %p206
        %p347 = pneg %p203
        %p348 = scmp.lt.s32.totalorder %s29, 1
        %s349 = scalar_select %p348, %s29, 1
        %s350 = smul.addr %s349, 2
        %s351 = smul.addr %s350, 8
        %s352 = scalar_lea.vmem %s6, %s351
        %p353 = pneg %p232
        %p354 = pneg %p229
        %s355 = sand.u32 %s29, 1
        %s356 = scalar_lea.sflag [#allocation5], %s355
        %s357 = sand.u32 %s219, 1
        %s358 = scalar_lea.vmem [#allocation6], %s357
        %p359 = pneg %p258
        %p360 = pneg %p255
        %s361 = sand.u32 %s245, 1
        %s362 = scalar_lea.sflag [#allocation8], %s361
        %s363 = sand.u32 %s245, 1
        %s364 = scalar_lea.vmem [#allocation7], %s363
        %p365 = scmp.lt.s32.totalorder %s29, 1
        %s366 = scalar_select %p365, %s29, 1
        %s367 = smul.addr %s366, 8
        %s368 = scalar_lea.vmem %s0, %s367
        %p369 = scmp.lt.s32.totalorder %s29, 1
        %s370 = scalar_select %p369, %s29, 1
        %s371 = smul.addr %s370, 2
        %s372 = smul.addr %s371, 8
        %s373 = scalar_lea.vmem %s1, %s372
        %p374 = scmp.lt.s32.totalorder %s29, 1
        %s375 = scalar_select %p374, %s29, 1
        %s376 = scalar_lea.vmem %s2, %s375
        %p377 = scmp.lt.s32.totalorder %s29, 1
        %s378 = scalar_select %p377, %s29, 1
        %s379 = scalar_lea.vmem %s3, %s378
        %p380 = scmp.lt.s32.totalorder %s29, 1
        %s381 = scalar_select %p380, %s29, 1
        %s382 = smul.addr %s381, 2
        %s383 = smul.addr %s382, 8
        %s384 = scalar_lea.vmem %s6, %s383
        %v385 = vld [vmem:[%s368] sm:$0xff]
        %v386 = vlaneseq
        %v387 = vand.u32 %v386, 127
        %vm388 = vcmask 261120
        %v389 = vsel %vm388, %v385, -inf
        %390 = vmax.xlane.f32.xlu0 %v389
        %v391 = vpop.xlane.xlu0 %390
        %v392 = vsub.f32 %v385, %v391
        %v393 = vmul.f32 %v392, 1.442695
        %v394 = vpow.pop %v393
        %v395 = vsel %vm388, %v394, 0.0
        %396 = vadd.xlane.f32.xlu0 %v395
        %v397 = vpop.xlane.xlu0 %396
        %v398 = vrcp.pop %v397
        %vm399 = vcmp.eq.s32.totalorder %v387, 0
        %v400 = vsel %vm399, -inf, %v385
        %v401 = vsel %vm388, %v400, -inf
        %402 = vmax.xlane.f32.xlu0 %v401
        %v403 = vpop.xlane.xlu0 %402
        %v404 = vsub.f32 %v403, %v391
        %v405 = vmul.f32 %v404, 1.442695
        %v406 = vpow.pop %v405
        %v407 = vmul.f32 %v406, %v398
        %vm408 = vcmp.eq.f32.partialorder %v400, %v403
        %v409 = vsub.s32 32, %v387
        %v410 = vsel %vm408, %v409, 0
        %v411 = vsel %vm388, %v410, 2147483648
        %v412 = vand.u32 %v411, 65535
        %v413 = vshra.s32 %v411, 16
        %v414 = vcvt.s32.f32 %v412
        %v415 = vcvt.s32.f32 %v413
        %416 = vmax.xlane.f32.xlu0 %v415
        %v417 = vpop.xlane.xlu0 %416
        %vm418 = vcmp.eq.f32.partialorder %v415, %v417
        %v419 = vsel %vm418, %v414, -inf
        %420 = vmax.xlane.f32.xlu0 %v419
        %v421 = vpop.xlane.xlu0 %420
        %v422 = vcvt.f32.s32 %v421
        %v423 = vcvt.f32.s32 %v417
        %v424 = vshll.u32 %v423, 16
        %v425 = vadd.s32 %v424, %v422
        %v426 = vsub.s32 32, %v425
        %v427 = vlaneseq
        %v428 = vshrl.u32 %v427, 7
        %vm429 = vcmp.eq.s32.totalorder %v428, %v387
        %v430 = vsel %vm429, %v407, 0.0
        %vm431 = vcmask 64512
        %v432 = vsel %vm431, %v430, 0.0
        %v433 = vrot.slane %v432, 4
        %v434 = vadd.f32 %v432, %v433
        %v435 = vrot.slane %v434, 2
        %v436 = vadd.f32 %v434, %v435
        %v437 = vrot.slane %v436, 1
        %v438 = vadd.f32 %v436, %v437
        %vm439 = vcmask 57344
        %440 = vst.msk [vmem:[%s339] sm:$0x1] %vm439, %v438
        %v441 = vsel %vm429, %v426, 0
        %v442 = vsel %vm431, %v441, 0
        %v443 = vrot.slane %v442, 4
        %v444 = vadd.s32 %v442, %v443
        %v445 = vrot.slane %v444, 2
        %v446 = vadd.s32 %v444, %v445
        %v447 = vrot.slane %v446, 1
        %v448 = vadd.s32 %v446, %v447
        %449 = vst.msk [vmem:[%s345] sm:$0x1] %vm439, %v448
        %v450 = vld [vmem:[%s376] sm:$0x1]
        %v451 = vld [vmem:[%s379] sm:$0x1]
        %v452 = vlaneseq
        %v453 = vshrl.u32 %v452, 7
        %v454 = vsub.s32 0, %v453
        %v455 = vrot.slane %v450, %v454
        %vm456 = vcmp.eq.s32.totalorder %v428, %v455
        %v457 = vsel %vm456, %v407, 0.0
        %v458 = vsel %vm431, %v457, 0.0
        %v459 = vrot.slane %v458, 4
        %v460 = vadd.f32 %v458, %v459
        %v461 = vrot.slane %v460, 2
        %v462 = vadd.f32 %v460, %v461
        %v463 = vrot.slane %v462, 1
        %v464 = vadd.f32 %v462, %v463
        %v465 = vlaneseq
        %v466 = vshrl.u32 %v465, 7
        %v467 = vsub.s32 0, %v466
        %v468 = vrot.slane %v451, %v467
        %vm469 = vcmp.eq.s32.totalorder %v428, %v468
        %v470 = vsel %vm469, %v407, 0.0
        %v471 = vsel %vm431, %v470, 0.0
        %v472 = vrot.slane %v471, 4
        %v473 = vadd.f32 %v471, %v472
        %v474 = vrot.slane %v473, 2
        %v475 = vadd.f32 %v473, %v474
        %v476 = vrot.slane %v475, 1
        %v477 = vadd.f32 %v475, %v476
        %v478 = vld [vmem:[%s373] sm:$0xff]
        %v479 = vld [vmem:[%s373 + $0x8] sm:$0xff]
        %v480 = vadd.s32 %v428, 8
        %v481 = vsel %vm431, %v478, -inf
        %v482 = vsel %vm431, %v479, -inf
        %v483 = vmax.f32 %v481, %v482
        %v484 = vrot.slane %v483, 4
        %v485 = vmax.f32 %v483, %v484
        %v486 = vrot.slane %v485, 2
        %v487 = vmax.f32 %v485, %v486
        %v488 = vrot.slane %v487, 1
        %v489 = vmax.f32 %v487, %v488
        %v490 = vsub.f32 %v478, %v489
        %v491 = vsub.f32 %v479, %v489
        %v492 = vmul.f32 %v490, 1.442695
        %v493 = vpow.pop %v492
        %v494 = vmul.f32 %v491, 1.442695
        %v495 = vpow.pop %v494
        %v496 = vsel %vm431, %v493, 0.0
        %v497 = vsel %vm431, %v495, 0.0
        %v498 = vadd.f32 %v496, %v497
        %v499 = vrot.slane %v498, 4
        %v500 = vadd.f32 %v498, %v499
        %v501 = vrot.slane %v500, 2
        %v502 = vadd.f32 %v500, %v501
        %v503 = vrot.slane %v502, 1
        %v504 = vadd.f32 %v502, %v503
        %v505 = vrcp.pop %v504
        %v506 = vmul.f32 %v493, %v505
        %v507 = vmul.f32 %v495, %v505
        %508 = vst.msk [vmem:[%s384] sm:$0xff] %vm431, %v506
        %509 = vst.msk [vmem:[%s384 + $0x8] sm:$0xff] %vm431, %v507
        %vm510 = vcmp.eq.s32.totalorder %v428, 0
        %vm511 = vcmp.eq.s32.totalorder %v480, 0
        %v512 = vsel %vm510, -inf, %v478
        %v513 = vsel %vm511, -inf, %v479
        %v514 = vsel %vm431, %v512, -inf
        %v515 = vsel %vm431, %v513, -inf
        %v516 = vmax.f32 %v514, %v515
        %v517 = vrot.slane %v516, 4
        %v518 = vmax.f32 %v516, %v517
        %v519 = vrot.slane %v518, 2
        %v520 = vmax.f32 %v518, %v519
        %v521 = vrot.slane %v520, 1
        %v522 = vmax.f32 %v520, %v521
        %v523 = vsub.f32 %v522, %v489
        %v524 = vmul.f32 %v523, 1.442695
        %v525 = vpow.pop %v524
        %v526 = vmul.f32 %v525, %v505
        %vm527 = vcmp.eq.f32.partialorder %v512, %v522
        %vm528 = vcmp.eq.f32.partialorder %v513, %v522
        %v529 = vsub.s32 16, %v428
        %v530 = vsub.s32 16, %v480
        %v531 = vsel %vm527, %v529, 0
        %v532 = vsel %vm528, %v530, 0
        %v533 = vsel %vm431, %v531, 2147483648
        %v534 = vsel %vm431, %v532, 2147483648
        %vm535 = vcmp.gt.s32.totalorder %v533, %v534
        %v536 = vsel %vm535, %v533, %v534
        %v537 = vrot.slane %v536, 4
        %vm538 = vcmp.gt.s32.totalorder %v536, %v537
        %v539 = vsel %vm538, %v536, %v537
        %v540 = vrot.slane %v539, 2
        %vm541 = vcmp.gt.s32.totalorder %v539, %v540
        %v542 = vsel %vm541, %v539, %v540
        %v543 = vrot.slane %v542, 1
        %vm544 = vcmp.gt.s32.totalorder %v542, %v543
        %v545 = vsel %vm544, %v542, %v543
        %v546 = vsub.s32 16, %v545
        %547 = vst.msk [vmem:[%s358] sm:$0x1] %vm439, %v546
        %v548 = vmul.f32 %v526, %v464
        %v549 = vmul.f32 %v548, %v477
        %550 = vst.msk [vmem:[%s364] sm:$0x1] %vm439, %v549
        %s551 = sand.u32 %s141, 1
        %s552 = scalar_lea.sflag [#allocation3], %s551
        %s553 = sand.u32 %s141, 1
        %s554 = scalar_lea.vmem [#allocation2], %s553
        %s555 = sand.u32 %s29, 1
        %s556 = scalar_lea.sflag [#allocation5], %s555
        %s557 = sand.u32 %s167, 1
        %s558 = scalar_lea.vmem [#allocation4], %s557
        %p559 = scmp.lt.s32.totalorder %s29, 1
        %s560 = scalar_select %p559, %s29, 1
        %s561 = smul.addr %s560, 2
        %s562 = smul.addr %s561, 8
        %s563 = scalar_lea.vmem %s6, %s562
        %s564 = sand.u32 %s29, 1
        %s565 = scalar_lea.sflag [#allocation5], %s564
        %s566 = sand.u32 %s219, 1
        %s567 = scalar_lea.vmem [#allocation6], %s566
        %s568 = sand.u32 %s245, 1
        %s569 = scalar_lea.sflag [#allocation8], %s568
        %s570 = sand.u32 %s245, 1
        %s571 = scalar_lea.vmem [#allocation7], %s570
        // Predicated region
        $region37: #{tpu_custom_call.1} parent=35 // pred_check
          %p572 = pneg %p151
        $region38: #{tpu_custom_call.1} parent=35 // pred_check_branch
          %574 = sbr.rel (%p572) target = $region40
        $region39: #{tpu_custom_call.1} parent=35 // pred_region
          %s576 = ssub.s32 16, 16
          %577 = vsyncadd %s552, %s576
          %s578 = smul.addr %s29, 16
          %s579 = scalar_lea.hbm %s4, %s578
          %s581 = sshll.u32 %s554, 4
          %s582 = int_to_ptr.vmem [resolvable:$true] %s581
          %584 = dma.vmem_to_hbm [thread:$0]  %s582, 16, %s579, %s552
        $region40: #{tpu_custom_call.1} parent=35 // pred_fallthru
          _
        // Predicated region
        $region41: #{tpu_custom_call.1} parent=35 // pred_check
          %p585 = pneg %p177
        $region42: #{tpu_custom_call.1} parent=35 // pred_check_branch
          %587 = sbr.rel (%p585) target = $region44
        $region43: #{tpu_custom_call.1} parent=35 // pred_region
          %s589 = ssub.s32 16, 16
          %590 = vsyncadd %s556, %s589
          %s591 = smul.addr %s29, 16
          %s592 = scalar_lea.hbm %s5, %s591
          %s594 = sshll.u32 %s558, 4
          %s595 = int_to_ptr.vmem [resolvable:$true] %s594
          %597 = dma.vmem_to_hbm [thread:$0]  %s595, 16, %s592, %s556
        $region44: #{tpu_custom_call.1} parent=35 // pred_fallthru
          _
        // Predicated region
        $region45: #{tpu_custom_call.1} parent=35 // pred_check
          %p598 = pneg %p203
        $region46: #{tpu_custom_call.1} parent=35 // pred_check_branch
          %600 = sbr.rel (%p598) target = $region48
        $region47: #{tpu_custom_call.1} parent=35 // pred_region
          _
        $region48: #{tpu_custom_call.1} parent=35 // pred_fallthru
          _
        // Predicated region
        $region49: #{tpu_custom_call.1} parent=35 // pred_check
          %p601 = pneg %p229
        $region50: #{tpu_custom_call.1} parent=35 // pred_check_branch
          %603 = sbr.rel (%p601) target = $region52
        $region51: #{tpu_custom_call.1} parent=35 // pred_region
          %s605 = ssub.s32 16, 16
          %606 = vsyncadd %s565, %s605
          %s607 = smul.addr %s29, 16
          %s608 = scalar_lea.hbm %s7, %s607
          %s610 = sshll.u32 %s567, 4
          %s611 = int_to_ptr.vmem [resolvable:$true] %s610
          %613 = dma.vmem_to_hbm [thread:$0]  %s611, 16, %s608, %s565
        $region52: #{tpu_custom_call.1} parent=35 // pred_fallthru
          _
        // Predicated region
        $region53: #{tpu_custom_call.1} parent=35 // pred_check
          %p614 = pneg %p255
        $region54: #{tpu_custom_call.1} parent=35 // pred_check_branch
          %616 = sbr.rel (%p614) target = $region56
        $region55: #{tpu_custom_call.1} parent=35 // pred_region
          %s618 = ssub.s32 16, 16
          %619 = vsyncadd %s569, %s618
          %s620 = smul.addr %s29, 16
          %s621 = scalar_lea.hbm %s8, %s620
          %s623 = sshll.u32 %s571, 4
          %s624 = int_to_ptr.vmem [resolvable:$true] %s623
          %626 = dma.vmem_to_hbm [thread:$0]  %s624, 16, %s621, %s569
        $region56: #{tpu_custom_call.1} parent=35 // pred_fallthru
          _
      $region36: #{tpu_custom_call.1} parent=5 // pred_fallthru
        _
      %p627 = scmp.le.s32.totalorder 2, %s24
      // Predicated region
      $region57: #{tpu_custom_call.1} parent=5 // pred_check
        %p628 = pneg %p627
      $region58: #{tpu_custom_call.1} parent=5 // pred_check_branch
        %630 = sbr.rel (%p628) target = $region60
      $region59: #{tpu_custom_call.1} parent=5 // pred_region
        %s631 = ssub.s32 %s24, 2
        // Predicated region
        $region61: #{tpu_custom_call.1} parent=59 // pred_check
          %p632 = pneg %p157
        $region62: #{tpu_custom_call.1} parent=59 // pred_check_branch
          %634 = sbr.rel (%p632) target = $region64
        $region63: #{tpu_custom_call.1} parent=59 // pred_region
          %s635 = sand.u32 %s142, 1
          %s636 = scalar_lea.sflag [#allocation3], %s635
          %s637 = sand.u32 %s142, 1
          %s638 = scalar_lea.vmem [#allocation2], %s637
          %639 = dma.done %s636, 16
        $region64: #{tpu_custom_call.1} parent=59 // pred_fallthru
          _
        // Predicated region
        $region65: #{tpu_custom_call.1} parent=59 // pred_check
          %p640 = pneg %p183
        $region66: #{tpu_custom_call.1} parent=59 // pred_check_branch
          %642 = sbr.rel (%p640) target = $region68
        $region67: #{tpu_custom_call.1} parent=59 // pred_region
          %s643 = sand.u32 %s30, 1
          %s644 = scalar_lea.sflag [#allocation5], %s643
          %s645 = sand.u32 %s168, 1
          %s646 = scalar_lea.vmem [#allocation4], %s645
          %647 = dma.done %s644, 16
        $region68: #{tpu_custom_call.1} parent=59 // pred_fallthru
          _
        // Predicated region
        $region69: #{tpu_custom_call.1} parent=59 // pred_check
          %p648 = pneg %p209
        $region70: #{tpu_custom_call.1} parent=59 // pred_check_branch
          %650 = sbr.rel (%p648) target = $region72
        $region71: #{tpu_custom_call.1} parent=59 // pred_region
          %p651 = scmp.lt.s32.totalorder %s30, 1
          %s652 = scalar_select %p651, %s30, 1
          %s653 = smul.addr %s652, 2
          %s654 = smul.addr %s653, 8
          %s655 = scalar_lea.vmem %s6, %s654
        $region72: #{tpu_custom_call.1} parent=59 // pred_fallthru
          _
        // Predicated region
        $region73: #{tpu_custom_call.1} parent=59 // pred_check
          %p656 = pneg %p235
        $region74: #{tpu_custom_call.1} parent=59 // pred_check_branch
          %658 = sbr.rel (%p656) target = $region76
        $region75: #{tpu_custom_call.1} parent=59 // pred_region
          %s659 = sand.u32 %s30, 1
          %s660 = scalar_lea.sflag [#allocation5], %s659
          %s661 = sand.u32 %s220, 1
          %s662 = scalar_lea.vmem [#allocation6], %s661
          %663 = dma.done %s660, 16
        $region76: #{tpu_custom_call.1} parent=59 // pred_fallthru
          _
        // Predicated region
        $region77: #{tpu_custom_call.1} parent=59 // pred_check
          %p664 = pneg %p261
        $region78: #{tpu_custom_call.1} parent=59 // pred_check_branch
          %666 = sbr.rel (%p664) target = $region80
        $region79: #{tpu_custom_call.1} parent=59 // pred_region
          %s667 = sand.u32 %s246, 1
          %s668 = scalar_lea.sflag [#allocation8], %s667
          %s669 = sand.u32 %s246, 1
          %s670 = scalar_lea.vmem [#allocation7], %s669
          %671 = dma.done %s668, 16
        $region80: #{tpu_custom_call.1} parent=59 // pred_fallthru
          _
      $region60: #{tpu_custom_call.1} parent=5 // pred_fallthru
        _
    $region6: #{tpu_custom_call.1} parent=1 // loop_footer
      %s28 = sadd.s32 1, %s24
    $region7: #{tpu_custom_call.1} parent=1 // loop_footer_branch
      %23 = sbr.rel target = $region3
    $region8: #{tpu_custom_call.1} parent=1 // loop_exit
      _
    %672 = vsyncpa [#allocation3], 1
    %s673 = scalar_lea.sflag [#allocation3], 1
    %674 = vsyncpa %s673, 1
    %675 = vsyncpa [#allocation5], 1
    %s676 = scalar_lea.sflag [#allocation5], 1
    %677 = vsyncpa %s676, 1
    %678 = vsyncpa [#allocation8], 1
    %s679 = scalar_lea.sflag [#allocation8], 1
    %680 = vsyncpa %s679, 1

</llo_original>
